<compile_context>
chip_gen: v7x
topology: tpu7x:2x2x1
jax: 0.10.0
libtpu: 0.0.40
codegen_flags: <defaults>
</compile_context>

<pallas_src>
import math
import functools

import jax
import jax.numpy as jnp
from jax.experimental import pallas as pl
from jax.experimental.pallas import tpu as pltpu


def _arcface_kernel(y_ref, x_ref, w_ref, o_ref, *, s_cos_m, s_sin_m, scale):
    """One grid step handles the full batch and one tile of classes.

    y_ref: (B, 1)  int32 labels              (same block every step)
    x_ref: (B, E)  row-normalized embeddings (bf16, same block every step)
    w_ref: (E, TC) raw weight column tile    (bf16)
    o_ref: (B, TC) output logits tile        (f32)
    """
    j = pl.program_id(0)

    x = x_ref[...]
    w = w_ref[...]

    # Per-column inverse L2 norm, computed in f32 from the streamed bf16 tile.
    # Applied post-matmul (B*TC multiplies) instead of dividing the whole
    # (E, TC) tile; rsqrt lowers to the EUP slot.
    w32 = w.astype(jnp.float32)
    inv_w_norm = jax.lax.rsqrt(
        jnp.maximum(jnp.sum(w32 * w32, axis=0, keepdims=True), 1e-24)
    )

    # MXU matmul: bf16 x bf16 -> f32 accumulate, then column normalization.
    cos = jnp.dot(x, w, preferred_element_type=jnp.float32) * inv_w_norm

    # cos(acos(clamp(t)) + m) == t*cos(m) - sqrt(1 - t^2)*sin(m); the ArcFace
    # scale is folded into the constants.
    t = jnp.clip(cos, -1.0 + 1e-7, 1.0 - 1e-7)
    target = t * s_cos_m - jnp.sqrt(1.0 - t * t) * s_sin_m

    B, TC = cos.shape
    cls_ids = jax.lax.broadcasted_iota(jnp.int32, (B, TC), 1) + j * TC
    out = jnp.where(cls_ids == y_ref[...], target, cos * scale)
    o_ref[...] = out.astype(o_ref.dtype)


def _pick_tile_c(num_classes, embed, batch, w_bytes, out_bytes=4,
                 buffer_budget=32 * 1024 * 1024, max_tile=8192):
    """Largest class tile (multiple of 128 dividing num_classes) whose
    double-buffered weight + output tiles fit the VMEM buffer budget.
    Prefers keeping >= 2 grid steps so the class axis can still shard across
    the two v7x TensorCores."""
    best_any = 128
    best_multi = None
    tc = 128
    while tc <= min(num_classes, max_tile):
        if num_classes % tc == 0:
            need = 2 * embed * tc * w_bytes + 2 * batch * tc * out_bytes
            if need <= buffer_budget:
                best_any = tc
                if num_classes // tc >= 2:
                    best_multi = tc
        tc += 128
    return best_multi if best_multi is not None else best_any


def arcface_forward(x, y, w_linear_weight, *, scale=64.0, margin=0.5,
                    tile_c=None, compute_dtype=jnp.bfloat16):
    """ArcFaceLayer.forward (the `head(backbone(x), y)` part of the model).

    x: (B, E) float32 embeddings (i.e. backbone output)
    y: (B,)  int32 class labels
    w_linear_weight: (num_classes, E) float32 -- nn.Linear(E, num_classes).weight
    """
    B, E = x.shape
    num_classes = w_linear_weight.shape[0]
    assert num_classes % 128 == 0, "num_classes must be a multiple of 128"
    out_dtype = x.dtype

    # torch: self.W.weight.view(-1, self.num_classes) -- raw row-major reshape,
    # NOT a transpose.  Stream it as bf16 (halves HBM traffic; kernel is
    # weight-streaming bound).
    w = jnp.reshape(w_linear_weight, (E, num_classes)).astype(compute_dtype)

    # Hoist the row L2-normalization out of the grid loop (done once, in f32).
    xn = x.astype(jnp.float32)
    xn = xn / jnp.maximum(jnp.linalg.norm(xn, axis=1, keepdims=True), 1e-12)
    xn = xn.astype(compute_dtype)

    y2d = y.astype(jnp.int32).reshape(B, 1)

    w_bytes = jnp.dtype(compute_dtype).itemsize
    if tile_c is None:
        tile_c = _pick_tile_c(num_classes, E, B, w_bytes)
    assert num_classes % tile_c == 0 and tile_c % 128 == 0

    # TODO(synk): for production batch sizes >> 8, add a batch grid axis
    # (block B in multiples of 8/16) to reuse each streamed weight tile.

    kernel = functools.partial(
        _arcface_kernel,
        s_cos_m=float(scale * math.cos(margin)),
        s_sin_m=float(scale * math.sin(margin)),
        scale=float(scale),
    )

    grid = (num_classes // tile_c,)
    return pl.pallas_call(
        kernel,
        out_shape=jax.ShapeDtypeStruct((B, num_classes), out_dtype),
        grid_spec=pltpu.PrefetchScalarGridSpec(
            num_scalar_prefetch=0,
            grid=grid,
            in_specs=[
                pl.BlockSpec((B, 1), lambda j: (0, 0)),        # labels
                pl.BlockSpec((B, E), lambda j: (0, 0)),        # embeddings
                pl.BlockSpec((E, tile_c), lambda j: (0, j)),   # weight tile
            ],
            out_specs=pl.BlockSpec((B, tile_c), lambda j: (0, j)),
        ),
        compiler_params=pltpu.CompilerParams(
            dimension_semantics=("parallel",),
            vmem_limit_bytes=48 * 1024 * 1024,
        ),
    )(y2d, xn, w)


def arcface_reference(x, y, w_linear_weight, *, scale=64.0, margin=0.5):
    """Plain-JAX f32 reference mirroring the PyTorch code verbatim."""
    E = x.shape[1]
    num_classes = w_linear_weight.shape[0]
    xn = x / jnp.maximum(jnp.linalg.norm(x, axis=1, keepdims=True), 1e-12)
    w = jnp.reshape(w_linear_weight, (E, num_classes))
    wn = w / jnp.maximum(jnp.linalg.norm(w, axis=0, keepdims=True), 1e-12)
    yoh = jax.nn.one_hot(y, num_classes, dtype=x.dtype)
    logits = xn @ wn
    theta = jnp.arccos(jnp.clip(logits, -1.0 + 1e-7, 1.0 - 1e-7))
    target_logits = jnp.cos(theta + margin)
    return (logits * (1.0 - yoh) + target_logits * yoh) * scale


def arcface_reference_bf16(x, y, w_linear_weight, *, scale=64.0, margin=0.5,
                           compute_dtype=jnp.bfloat16):
    """Reference that mirrors the kernel's bf16 input rounding exactly
    (f32 math on bf16-rounded values) -> comparable at tight tolerance."""
    E = x.shape[1]
    num_classes = w_linear_weight.shape[0]
    xn = x / jnp.maximum(jnp.linalg.norm(x, axis=1, keepdims=True), 1e-12)
    xn = xn.astype(compute_dtype).astype(jnp.float32)
    w = jnp.reshape(w_linear_weight, (E, num_classes))
    w = w.astype(compute_dtype).astype(jnp.float32)
    inv = jax.lax.rsqrt(jnp.maximum(jnp.sum(w * w, axis=0, keepdims=True), 1e-24))
    logits = jnp.dot(xn, w, precision=jax.lax.Precision.HIGHEST) * inv
    t = jnp.clip(logits, -1.0 + 1e-7, 1.0 - 1e-7)
    target = t * math.cos(margin) - jnp.sqrt(1.0 - t * t) * math.sin(margin)
    yoh = jax.nn.one_hot(y, num_classes, dtype=jnp.float32)
    return (logits * (1.0 - yoh) + target * yoh) * scale


if __name__ == "__main__":
    # Small shapes consistent with the module (embedding_size, num_classes).
    B = 8
    EMBEDDING_SIZE = 128
    NUM_CLASSES = 1024          # -> auto tile_c = 512, grid = (2,)
    SCALE = 64.0
    MARGIN = 0.5

    key = jax.random.PRNGKey(0)
    kx, kw, ky = jax.random.split(key, 3)

    x = jax.random.normal(kx, (B, EMBEDDING_SIZE), dtype=jnp.float32)
    # Deterministic synthetic nn.Linear(E, C).weight of shape (C, E).
    w_linear_weight = 0.05 * jax.random.normal(
        kw, (NUM_CLASSES, EMBEDDING_SIZE), dtype=jnp.float32
    )
    y = jax.random.randint(ky, (B,), 0, NUM_CLASSES, dtype=jnp.int32)

    out = arcface_forward(x, y, w_linear_weight, scale=SCALE, margin=MARGIN)
    out = jax.block_until_ready(out)
    assert out.shape == (B, NUM_CLASSES)

    # Tight check against a reference using the same bf16-rounded inputs.
    ref_tight = arcface_reference_bf16(
        x, y, w_linear_weight, scale=SCALE, margin=MARGIN
    )
    assert jnp.allclose(out, ref_tight, atol=2e-2, rtol=1e-3), (
        float(jnp.max(jnp.abs(out - ref_tight)))
    )

    # Loose sanity check against the full-f32 PyTorch-equivalent reference
    # (bf16 weight/embedding streaming => relaxed tolerance).
    ref_f32 = arcface_reference(x, y, w_linear_weight, scale=SCALE, margin=MARGIN)
    assert jnp.allclose(out, ref_f32, atol=0.75, rtol=1e-2), (
        float(jnp.max(jnp.abs(out - ref_f32)))
    )

    print("KERNEL_OK")
</pallas_src>

<mosaic_0001>
module attributes {stable_mosaic.version = 11 : i64} {
  func.func @_arcface_kernel(%arg0: i32, %arg1: memref<8x1xi32, #tpu.memory_space<vmem>>, %arg2: memref<8x128xbf16, #tpu.memory_space<vmem>>, %arg3: memref<128x512xbf16, #tpu.memory_space<vmem>>, %arg4: memref<8x512xf32, #tpu.memory_space<vmem>>) attributes {dimension_semantics = [#tpu.dimension_semantics<parallel>], iteration_bounds = array<i64: 2>, scalar_prefetch = 0 : i64, scratch_operands = 0 : i64, tpu.core_type = #tpu.core_type<tc>, window_params = [{pipeline_mode = #tpu.pipeline_mode<synchronous>, transform_indices = @transform_0, window_bounds = array<i64: 8, 1>}, {pipeline_mode = #tpu.pipeline_mode<synchronous>, transform_indices = @transform_1, window_bounds = array<i64: 8, 128>}, {transform_indices = @transform_2, window_bounds = array<i64: 128, 512>}, {transform_indices = @transform_3, window_bounds = array<i64: 8, 512>}]} {
    %c0 = arith.constant 0 : index
    %c0_0 = arith.constant 0 : index
    %0 = vector.load %arg2[%c0, %c0_0] : memref<8x128xbf16, #tpu.memory_space<vmem>>, vector<8x128xbf16>
    %c0_1 = arith.constant 0 : index
    %c0_2 = arith.constant 0 : index
    %1 = vector.load %arg3[%c0_1, %c0_2] : memref<128x512xbf16, #tpu.memory_space<vmem>>, vector<128x512xbf16>
    %2 = arith.extf %1 : vector<128x512xbf16> to vector<128x512xf32>
    %3 = arith.mulf %2, %2 : vector<128x512xf32>
    %cst = arith.constant dense<0.000000e+00> : vector<512xf32>
    %4 = vector.multi_reduction <add>, %3, %cst [0] : vector<128x512xf32> to vector<512xf32>
    %5 = vector.shape_cast %4 : vector<512xf32> to vector<1x512xf32>
    %cst_3 = arith.constant 1.000000e-24 : f32
    %6 = vector.broadcast %cst_3 : f32 to vector<1x512xf32>
    %7 = arith.maximumf %5, %6 : vector<1x512xf32>
    %8 = math.rsqrt %7 : vector<1x512xf32>
    %cst_4 = arith.constant dense<0.000000e+00> : vector<8x512xf32>
    %9 = tpu.matmul %0, %1, %cst_4 {dimension_numbers = #tpu.dot_dimension_numbers<[1], [0], [0], [1], [0, 0, 1, 1], [], []>} : vector<8x128xbf16>, vector<128x512xbf16>, vector<8x512xf32> -> vector<8x512xf32>
    %10 = vector.broadcast %8 : vector<1x512xf32> to vector<8x512xf32>
    %11 = arith.mulf %9, %10 : vector<8x512xf32>
    %cst_5 = arith.constant -0.99999988 : f32
    %cst_6 = arith.constant 0.99999988 : f32
    %12 = vector.broadcast %cst_5 : f32 to vector<8x512xf32>
    %13 = arith.maximumf %12, %11 : vector<8x512xf32>
    %14 = vector.broadcast %cst_6 : f32 to vector<8x512xf32>
    %15 = arith.minimumf %14, %13 : vector<8x512xf32>
    %cst_7 = arith.constant 56.1652832 : f32
    %16 = vector.broadcast %cst_7 : f32 to vector<8x512xf32>
    %17 = arith.mulf %15, %16 : vector<8x512xf32>
    %18 = arith.mulf %15, %15 : vector<8x512xf32>
    %cst_8 = arith.constant 1.000000e+00 : f32
    %19 = vector.broadcast %cst_8 : f32 to vector<8x512xf32>
    %20 = arith.subf %19, %18 : vector<8x512xf32>
    %21 = math.sqrt %20 : vector<8x512xf32>
    %cst_9 = arith.constant 30.6832352 : f32
    %22 = vector.broadcast %cst_9 : f32 to vector<8x512xf32>
    %23 = arith.mulf %21, %22 : vector<8x512xf32>
    %24 = arith.subf %17, %23 : vector<8x512xf32>
    %25 = tpu.iota {dimensions = array<i32: 1>} : vector<8x512xi32>
    %c512_i32 = arith.constant 512 : i32
    %26 = arith.muli %arg0, %c512_i32 : i32
    %27 = vector.broadcast %26 : i32 to vector<8x512xi32>
    %28 = arith.addi %25, %27 : vector<8x512xi32>
    %c0_10 = arith.constant 0 : index
    %c0_11 = arith.constant 0 : index
    %29 = vector.load %arg1[%c0_10, %c0_11] : memref<8x1xi32, #tpu.memory_space<vmem>>, vector<8x1xi32>
    %30 = vector.broadcast %29 : vector<8x1xi32> to vector<8x512xi32>
    %31 = arith.cmpi eq, %28, %30 : vector<8x512xi32>
    %cst_12 = arith.constant 6.400000e+01 : f32
    %32 = vector.broadcast %cst_12 : f32 to vector<8x512xf32>
    %33 = arith.mulf %11, %32 : vector<8x512xf32>
    %34 = arith.select %31, %24, %33 : vector<8x512xi1>, vector<8x512xf32>
    %c0_13 = arith.constant 0 : index
    %c0_14 = arith.constant 0 : index
    %35 = vector.load %arg4[%c0_13, %c0_14] : memref<8x512xf32, #tpu.memory_space<vmem>>, vector<8x512xf32>
    tpu.vector_store %arg4[%c0_13, %c0_14], %34 {strides = array<i32>} : memref<8x512xf32, #tpu.memory_space<vmem>>, vector<8x512xf32>,
    return
  }
  func.func @transform_0(%arg0: i32) -> (i32, i32) {
    %c0_i32 = arith.constant 0 : i32
    %c0_i32_0 = arith.constant 0 : i32
    %c0_i32_1 = arith.constant 0 : i32
    return %c0_i32, %c0_i32_0 : i32, i32
  }
  func.func @transform_1(%arg0: i32) -> (i32, i32) {
    %c0_i32 = arith.constant 0 : i32
    %c0_i32_0 = arith.constant 0 : i32
    %c0_i32_1 = arith.constant 0 : i32
    return %c0_i32, %c0_i32_0 : i32, i32
  }
  func.func @transform_2(%arg0: i32) -> (i32, i32) {
    %c0_i32 = arith.constant 0 : i32
    %c0_i32_0 = arith.constant 0 : i32
    return %c0_i32, %arg0 : i32, i32
  }
  func.func @transform_3(%arg0: i32) -> (i32, i32) {
    %c0_i32 = arith.constant 0 : i32
    %c0_i32_0 = arith.constant 0 : i32
    return %c0_i32, %arg0 : i32, i32
  }
}

</mosaic_0001>

<llo_original>
// kernel: tpu_custom_call.1
$region0: #{tpu_custom_call.1}
  #allocation0 [shape = 'u32[]', space=smem, size = 0x4, offset = 0x4, fixed_abs, tag = 'smem constant byte address 0x4 - core index']
  #allocation1 [shape = 'u32[144,128]{1,0:T(1,128)}', space=vmem, size = 0x12000, scoped, tag = 'internal scratch']
  %s0 = inlined_call_operand.vmem [shape: s32[8,1], index: 0, kind: input, shape index: {}]
  %s1 = inlined_call_operand.vmem [shape: bf16[8,128], index: 1, kind: input, shape index: {}]
  %s2 = inlined_call_operand.hbm [shape: bf16[128,1024], index: 2, kind: input, shape index: {}]
  %s3 = inlined_call_operand.hbm [shape: f32[8,1024], index: 3, kind: output, shape index: {}]
  %s4 = sld [smem:[#allocation0]]
  $region49: #{tpu_custom_call.1} parent=0
    _
  %s6 = ssub.s32 1, %s4
  %s7 = scalar_select 0, %s6, %s4
  $region1: #{tpu_custom_call.1} parent=0
    #allocation2 [shape = 'u8[262144]{0}', space=vmem, size = 0x40000, scoped, tag = 'input window, operand 2']
    #allocation3 [shape = 's32[2]{0}', space=sflag, size = 0x8, scoped, tag = 'scoped memory for tpu_custom_call.1']
    #allocation4 [shape = 's32[2]{0}', space=sflag, size = 0x8, scoped, tag = 'scoped memory for tpu_custom_call.1']
    #allocation5 [shape = 'u8[32768]{0}', space=vmem, size = 0x8000, scoped, tag = 'output window, operand 0']
    %8 = vsyncpa [#allocation3], 0
    %s9 = scalar_lea.sflag [#allocation3], 1
    %10 = vsyncpa %s9, 0
    %11 = vsyncpa [#allocation4], 0
    %s12 = scalar_lea.sflag [#allocation4], 1
    %13 = vsyncpa %s12, 0
    loop: start=0, step=1, limit=4
    $region2: #{tpu_custom_call.1} parent=1 // loop_pre_header
      _
    $region3: #{tpu_custom_call.1} parent=1 // loop_header
      %s15 = sphi 0, %s19
      %p16 = scmp.ge.s32.totalorder %s15, 4
      %s23 = sphi 0, %s23
      %s25 = sphi 0, %s23
      %s26 = sphi 0, %s25
      %s40 = sphi 0, %s26
      %s44 = sphi 0, %s44
      %s46 = sphi 0, %s44
      %s47 = sphi 0, %s46
      %s61 = sphi 0, %s47
      %s67 = sphi 0, %s69
      %s70 = sphi 0, %s67
      %s71 = sphi 0, %s70
      %s87 = sphi 0, %s71
      %s93 = sphi 0, %s95
      %s96 = sphi 0, %s93
      %s97 = sphi 0, %s96
      %s113 = sphi 0, %s97
    $region4: #{tpu_custom_call.1} parent=1 // loop_header_branch
      %18 = sbr.rel (%p16) target = $region8
    $region5: #{tpu_custom_call.1} parent=1 // loop_body
      %s20 = ssub.s32 %s15, 1
      %s21 = ssub.s32 %s15, 2
      %s22 = sadd.s32 %s15, 1
      %s24 = sadd.s32 %s23, 1
      %p27 = scmp.eq.s32.totalorder %s15, 1
      %p28 = scmp.ne.s32.totalorder %s23, %s25
      %p29 = scmp.eq.s32.totalorder %s15, 0
      %p30 = por %p28, %p29
      %p31 = scmp.ne.s32.totalorder %s23, %s25
      %p32 = scmp.eq.s32.totalorder %s20, 1
      %p33 = por %p31, %p32
      %p34 = scmp.ne.s32.totalorder %s25, %s26
      %p35 = scmp.eq.s32.totalorder %s20, 0
      %p36 = por %p34, %p35
      %p37 = scmp.ne.s32.totalorder %s25, %s26
      %p38 = scmp.eq.s32.totalorder %s21, 1
      %p39 = por %p37, %p38
      %p41 = scmp.ne.s32.totalorder %s26, %s40
      %p42 = scmp.eq.s32.totalorder %s21, 0
      %p43 = por %p41, %p42
      %s45 = sadd.s32 %s44, 1
      %p48 = scmp.eq.s32.totalorder %s15, 1
      %p49 = scmp.ne.s32.totalorder %s44, %s46
      %p50 = scmp.eq.s32.totalorder %s15, 0
      %p51 = por %p49, %p50
      %p52 = scmp.ne.s32.totalorder %s44, %s46
      %p53 = scmp.eq.s32.totalorder %s20, 1
      %p54 = por %p52, %p53
      %p55 = scmp.ne.s32.totalorder %s46, %s47
      %p56 = scmp.eq.s32.totalorder %s20, 0
      %p57 = por %p55, %p56
      %p58 = scmp.ne.s32.totalorder %s46, %s47
      %p59 = scmp.eq.s32.totalorder %s21, 1
      %p60 = por %p58, %p59
      %p62 = scmp.ne.s32.totalorder %s47, %s61
      %p63 = scmp.eq.s32.totalorder %s21, 0
      %p64 = por %p62, %p63
      %s65 = ssub.s32 %s15, %s22
      %p66 = scmp.eq.s32.totalorder %s65, 0
      %s68 = sadd.s32 %s67, 1
      %s69 = scalar_select %p66, %s67, %s68
      %p72 = pneg %p66
      %p73 = scmp.eq.s32.totalorder %s15, 1
      %p74 = por %p72, %p73
      %p75 = scmp.ne.s32.totalorder %s67, %s70
      %p76 = scmp.eq.s32.totalorder %s15, 0
      %p77 = por %p75, %p76
      %p78 = scmp.ne.s32.totalorder %s67, %s70
      %p79 = scmp.eq.s32.totalorder %s20, 1
      %p80 = por %p78, %p79
      %p81 = scmp.ne.s32.totalorder %s70, %s71
      %p82 = scmp.eq.s32.totalorder %s20, 0
      %p83 = por %p81, %p82
      %p84 = scmp.ne.s32.totalorder %s70, %s71
      %p85 = scmp.eq.s32.totalorder %s21, 1
      %p86 = por %p84, %p85
      %p88 = scmp.ne.s32.totalorder %s71, %s87
      %p89 = scmp.eq.s32.totalorder %s21, 0
      %p90 = por %p88, %p89
      %s91 = ssub.s32 %s15, %s22
      %p92 = scmp.eq.s32.totalorder %s91, 0
      %s94 = sadd.s32 %s93, 1
      %s95 = scalar_select %p92, %s93, %s94
      %p98 = pneg %p92
      %p99 = scmp.eq.s32.totalorder %s15, 1
      %p100 = por %p98, %p99
      %p101 = scmp.ne.s32.totalorder %s93, %s96
      %p102 = scmp.eq.s32.totalorder %s15, 0
      %p103 = por %p101, %p102
      %p104 = scmp.ne.s32.totalorder %s93, %s96
      %p105 = scmp.eq.s32.totalorder %s20, 1
      %p106 = por %p104, %p105
      %p107 = scmp.ne.s32.totalorder %s96, %s97
      %p108 = scmp.eq.s32.totalorder %s20, 0
      %p109 = por %p107, %p108
      %p110 = scmp.ne.s32.totalorder %s96, %s97
      %p111 = scmp.eq.s32.totalorder %s21, 1
      %p112 = por %p110, %p111
      %p114 = scmp.ne.s32.totalorder %s97, %s113
      %p115 = scmp.eq.s32.totalorder %s21, 0
      %p116 = por %p114, %p115
      %p117 = scmp.le.s32.totalorder 1, %s15
      %p118 = scmp.lt.s32.totalorder %s15, 3
      %p119 = pnand %p117, %p118
      %p120 = pneg %p119
      // Predicated region
      $region9: #{tpu_custom_call.1} parent=5 // pred_check
        _
      $region10: #{tpu_custom_call.1} parent=5 // pred_check_branch
        %122 = sbr.rel (%p119) target = $region12
      $region11: #{tpu_custom_call.1} parent=5 // pred_region
        %s123 = ssub.s32 %s15, 1
        // Predicated region
        $region13: #{tpu_custom_call.1} parent=11 // pred_check
          %p124 = pneg %p36
        $region14: #{tpu_custom_call.1} parent=11 // pred_check_branch
          %126 = sbr.rel (%p124) target = $region16
        $region15: #{tpu_custom_call.1} parent=11 // pred_region
          _
        $region16: #{tpu_custom_call.1} parent=11 // pred_fallthru
          _
        // Predicated region
        $region17: #{tpu_custom_call.1} parent=11 // pred_check
          %p127 = pneg %p57
        $region18: #{tpu_custom_call.1} parent=11 // pred_check_branch
          %129 = sbr.rel (%p127) target = $region20
        $region19: #{tpu_custom_call.1} parent=11 // pred_region
          _
        $region20: #{tpu_custom_call.1} parent=11 // pred_fallthru
          _
      $region12: #{tpu_custom_call.1} parent=5 // pred_fallthru
        _
      %p130 = scmp.lt.s32.totalorder %s15, 2
      // Predicated region
      $region21: #{tpu_custom_call.1} parent=5 // pred_check
        %p131 = pneg %p130
      $region22: #{tpu_custom_call.1} parent=5 // pred_check_branch
        %133 = sbr.rel (%p131) target = $region24
      $region23: #{tpu_custom_call.1} parent=5 // pred_region
        // Predicated region
        $region25: #{tpu_custom_call.1} parent=23 // pred_check
          %p134 = pneg %p77
        $region26: #{tpu_custom_call.1} parent=23 // pred_check_branch
          %136 = sbr.rel (%p134) target = $region28
        $region27: #{tpu_custom_call.1} parent=23 // pred_region
          %s137 = sand.u32 %s67, 1
          %s138 = scalar_lea.sflag [#allocation3], %s137
          %s139 = sand.u32 %s67, 1
          %s140 = smul.addr %s139, 256
          %s141 = scalar_lea.vmem [#allocation2], %s140
          %s142 = smul.u32 4, %s15
          %s144 = ssub.s32 4096, 4096
          %145 = vsyncadd %s138, %s144
          %s146 = smul.addr %s142, 64
          %s147 = scalar_lea.hbm %s2, %s146
          %s148 = sshll.u32 %s141, 4
          %s149 = int_to_ptr.vmem [resolvable:$true] %s148
          %154 = dma.hbm_to_vmem [thread:$0]  %s147, 4096, %s149, %s138, 512, 256, 16
        $region28: #{tpu_custom_call.1} parent=23 // pred_fallthru
          _
      $region24: #{tpu_custom_call.1} parent=5 // pred_fallthru
        _
      %p155 = scmp.le.s32.totalorder 1, %s15
      %p156 = scmp.lt.s32.totalorder %s15, 3
      %p157 = pnand %p155, %p156
      %p158 = pneg %p157
      // Predicated region
      $region29: #{tpu_custom_call.1} parent=5 // pred_check
        _
      $region30: #{tpu_custom_call.1} parent=5 // pred_check_branch
        %160 = sbr.rel (%p157) target = $region32
      $region31: #{tpu_custom_call.1} parent=5 // pred_region
        %s161 = ssub.s32 %s15, 1
        %s162 = sand.u32 %s70, 1
        %s163 = scalar_lea.sflag [#allocation3], %s162
        %s164 = sand.u32 %s70, 1
        %s165 = smul.addr %s164, 256
        %s166 = scalar_lea.vmem [#allocation2], %s165
        // Predicated region
        $region33: #{tpu_custom_call.1} parent=31 // pred_check
          %p167 = pneg %p83
        $region34: #{tpu_custom_call.1} parent=31 // pred_check_branch
          %169 = sbr.rel (%p167) target = $region36
        $region35: #{tpu_custom_call.1} parent=31 // pred_region
          %170 = dma.done %s163, 4096
        $region36: #{tpu_custom_call.1} parent=31 // pred_fallthru
          _
        %p171 = pneg %p36
        %p172 = pneg %p33
        %p173 = pneg %p57
        %p174 = pneg %p54
        %s175 = sand.u32 %s70, 1
        %s176 = scalar_lea.sflag [#allocation3], %s175
        %s177 = sand.u32 %s70, 1
        %s178 = smul.addr %s177, 256
        %s179 = scalar_lea.vmem [#allocation2], %s178
        %p180 = pneg %p83
        %p181 = pneg %p80
        %p182 = pneg %p109
        %p183 = pneg %p106
        %s184 = sand.u32 %s96, 1
        %s185 = scalar_lea.sflag [#allocation4], %s184
        %s186 = sand.u32 %s96, 1
        %s187 = smul.addr %s186, 32
        %s188 = scalar_lea.vmem [#allocation5], %s187
        %s189 = smul.u32 4, %s20
        %s190 = smul.u32 4, %s20
        %v192 = vld [vmem:[%s1] sm:$0xf]
        %v193 = vld [vmem:[%s166] sm:$0xff]
        %v194 = vld [vmem:[%s166 + $0x8] sm:$0xff]
        %v195 = vld [vmem:[%s166 + $0x10] sm:$0xff]
        %v196 = vld [vmem:[%s166 + $0x18] sm:$0xff]
        %v197 = vld [vmem:[%s166 + $0x20] sm:$0xff]
        %v198 = vld [vmem:[%s166 + $0x28] sm:$0xff]
        %v199 = vld [vmem:[%s166 + $0x30] sm:$0xff]
        %v200 = vld [vmem:[%s166 + $0x38] sm:$0xff]
        %v201 = vld [vmem:[%s166 + $0x40] sm:$0xff]
        %v202 = vld [vmem:[%s166 + $0x48] sm:$0xff]
        %v203 = vld [vmem:[%s166 + $0x50] sm:$0xff]
        %v204 = vld [vmem:[%s166 + $0x58] sm:$0xff]
        %v205 = vld [vmem:[%s166 + $0x60] sm:$0xff]
        %v206 = vld [vmem:[%s166 + $0x68] sm:$0xff]
        %v207 = vld [vmem:[%s166 + $0x70] sm:$0xff]
        %v208 = vld [vmem:[%s166 + $0x78] sm:$0xff]
        %v209 = vld [vmem:[%s166 + $0x80] sm:$0xff]
        %v210 = vld [vmem:[%s166 + $0x88] sm:$0xff]
        %v211 = vld [vmem:[%s166 + $0x90] sm:$0xff]
        %v212 = vld [vmem:[%s166 + $0x98] sm:$0xff]
        %v213 = vld [vmem:[%s166 + $0xa0] sm:$0xff]
        %v214 = vld [vmem:[%s166 + $0xa8] sm:$0xff]
        %v215 = vld [vmem:[%s166 + $0xb0] sm:$0xff]
        %v216 = vld [vmem:[%s166 + $0xb8] sm:$0xff]
        %v217 = vld [vmem:[%s166 + $0xc0] sm:$0xff]
        %v218 = vld [vmem:[%s166 + $0xc8] sm:$0xff]
        %v219 = vld [vmem:[%s166 + $0xd0] sm:$0xff]
        %v220 = vld [vmem:[%s166 + $0xd8] sm:$0xff]
        %v221 = vld [vmem:[%s166 + $0xe0] sm:$0xff]
        %v222 = vld [vmem:[%s166 + $0xe8] sm:$0xff]
        %v223 = vld [vmem:[%s166 + $0xf0] sm:$0xff]
        %v224 = vld [vmem:[%s166 + $0xf8] sm:$0xff]
        %v225 = vunpack.c.l.bf16 %v193
        %v226 = vunpack.c.h.bf16 %v193
        %v227 = vunpack.c.l.bf16 %v194
        %v228 = vunpack.c.h.bf16 %v194
        %v229 = vunpack.c.l.bf16 %v195
        %v230 = vunpack.c.h.bf16 %v195
        %v231 = vunpack.c.l.bf16 %v196
        %v232 = vunpack.c.h.bf16 %v196
        %v233 = vunpack.c.l.bf16 %v197
        %v234 = vunpack.c.h.bf16 %v197
        %v235 = vunpack.c.l.bf16 %v198
        %v236 = vunpack.c.h.bf16 %v198
        %v237 = vunpack.c.l.bf16 %v199
        %v238 = vunpack.c.h.bf16 %v199
        %v239 = vunpack.c.l.bf16 %v200
        %v240 = vunpack.c.h.bf16 %v200
        %v241 = vunpack.c.l.bf16 %v201
        %v242 = vunpack.c.h.bf16 %v201
        %v243 = vunpack.c.l.bf16 %v202
        %v244 = vunpack.c.h.bf16 %v202
        %v245 = vunpack.c.l.bf16 %v203
        %v246 = vunpack.c.h.bf16 %v203
        %v247 = vunpack.c.l.bf16 %v204
        %v248 = vunpack.c.h.bf16 %v204
        %v249 = vunpack.c.l.bf16 %v205
        %v250 = vunpack.c.h.bf16 %v205
        %v251 = vunpack.c.l.bf16 %v206
        %v252 = vunpack.c.h.bf16 %v206
        %v253 = vunpack.c.l.bf16 %v207
        %v254 = vunpack.c.h.bf16 %v207
        %v255 = vunpack.c.l.bf16 %v208
        %v256 = vunpack.c.h.bf16 %v208
        %v257 = vunpack.c.l.bf16 %v209
        %v258 = vunpack.c.h.bf16 %v209
        %v259 = vunpack.c.l.bf16 %v210
        %v260 = vunpack.c.h.bf16 %v210
        %v261 = vunpack.c.l.bf16 %v211
        %v262 = vunpack.c.h.bf16 %v211
        %v263 = vunpack.c.l.bf16 %v212
        %v264 = vunpack.c.h.bf16 %v212
        %v265 = vunpack.c.l.bf16 %v213
        %v266 = vunpack.c.h.bf16 %v213
        %v267 = vunpack.c.l.bf16 %v214
        %v268 = vunpack.c.h.bf16 %v214
        %v269 = vunpack.c.l.bf16 %v215
        %v270 = vunpack.c.h.bf16 %v215
        %v271 = vunpack.c.l.bf16 %v216
        %v272 = vunpack.c.h.bf16 %v216
        %v273 = vunpack.c.l.bf16 %v217
        %v274 = vunpack.c.h.bf16 %v217
        %v275 = vunpack.c.l.bf16 %v218
        %v276 = vunpack.c.h.bf16 %v218
        %v277 = vunpack.c.l.bf16 %v219
        %v278 = vunpack.c.h.bf16 %v219
        %v279 = vunpack.c.l.bf16 %v220
        %v280 = vunpack.c.h.bf16 %v220
        %v281 = vunpack.c.l.bf16 %v221
        %v282 = vunpack.c.h.bf16 %v221
        %v283 = vunpack.c.l.bf16 %v222
        %v284 = vunpack.c.h.bf16 %v222
        %v285 = vunpack.c.l.bf16 %v223
        %v286 = vunpack.c.h.bf16 %v223
        %v287 = vunpack.c.l.bf16 %v224
        %v288 = vunpack.c.h.bf16 %v224
        %v289 = vmul.f32 %v225, %v225
        %v290 = vmul.f32 %v226, %v226
        %v291 = vmul.f32 %v227, %v227
        %v292 = vmul.f32 %v228, %v228
        %v293 = vmul.f32 %v229, %v229
        %v294 = vmul.f32 %v230, %v230
        %v295 = vmul.f32 %v231, %v231
        %v296 = vmul.f32 %v232, %v232
        %v297 = vmul.f32 %v233, %v233
        %v298 = vmul.f32 %v234, %v234
        %v299 = vmul.f32 %v235, %v235
        %v300 = vmul.f32 %v236, %v236
        %v301 = vmul.f32 %v237, %v237
        %v302 = vmul.f32 %v238, %v238
        %v303 = vmul.f32 %v239, %v239
        %v304 = vmul.f32 %v240, %v240
        %v305 = vmul.f32 %v241, %v241
        %v306 = vmul.f32 %v242, %v242
        %v307 = vmul.f32 %v243, %v243
        %v308 = vmul.f32 %v244, %v244
        %v309 = vmul.f32 %v245, %v245
        %v310 = vmul.f32 %v246, %v246
        %v311 = vmul.f32 %v247, %v247
        %v312 = vmul.f32 %v248, %v248
        %v313 = vmul.f32 %v249, %v249
        %v314 = vmul.f32 %v250, %v250
        %v315 = vmul.f32 %v251, %v251
        %v316 = vmul.f32 %v252, %v252
        %v317 = vmul.f32 %v253, %v253
        %v318 = vmul.f32 %v254, %v254
        %v319 = vmul.f32 %v255, %v255
        %v320 = vmul.f32 %v256, %v256
        %v321 = vmul.f32 %v257, %v257
        %v322 = vmul.f32 %v258, %v258
        %v323 = vmul.f32 %v259, %v259
        %v324 = vmul.f32 %v260, %v260
        %v325 = vmul.f32 %v261, %v261
        %v326 = vmul.f32 %v262, %v262
        %v327 = vmul.f32 %v263, %v263
        %v328 = vmul.f32 %v264, %v264
        %v329 = vmul.f32 %v265, %v265
        %v330 = vmul.f32 %v266, %v266
        %v331 = vmul.f32 %v267, %v267
        %v332 = vmul.f32 %v268, %v268
        %v333 = vmul.f32 %v269, %v269
        %v334 = vmul.f32 %v270, %v270
        %v335 = vmul.f32 %v271, %v271
        %v336 = vmul.f32 %v272, %v272
        %v337 = vmul.f32 %v273, %v273
        %v338 = vmul.f32 %v274, %v274
        %v339 = vmul.f32 %v275, %v275
        %v340 = vmul.f32 %v276, %v276
        %v341 = vmul.f32 %v277, %v277
        %v342 = vmul.f32 %v278, %v278
        %v343 = vmul.f32 %v279, %v279
        %v344 = vmul.f32 %v280, %v280
        %v345 = vmul.f32 %v281, %v281
        %v346 = vmul.f32 %v282, %v282
        %v347 = vmul.f32 %v283, %v283
        %v348 = vmul.f32 %v284, %v284
        %v349 = vmul.f32 %v285, %v285
        %v350 = vmul.f32 %v286, %v286
        %v351 = vmul.f32 %v287, %v287
        %v352 = vmul.f32 %v288, %v288
        %v353 = vadd.f32 %v289, %v293
        %v354 = vadd.f32 %v353, %v297
        %v355 = vadd.f32 %v354, %v301
        %v356 = vadd.f32 %v355, %v305
        %v357 = vadd.f32 %v356, %v309
        %v358 = vadd.f32 %v357, %v313
        %v359 = vadd.f32 %v358, %v317
        %v360 = vadd.f32 %v359, %v321
        %v361 = vadd.f32 %v360, %v325
        %v362 = vadd.f32 %v361, %v329
        %v363 = vadd.f32 %v362, %v333
        %v364 = vadd.f32 %v363, %v337
        %v365 = vadd.f32 %v364, %v341
        %v366 = vadd.f32 %v365, %v345
        %v367 = vadd.f32 %v366, %v349
        %v368 = vrot.slane %v367, 4
        %v369 = vadd.f32 %v367, %v368
        %v370 = vrot.slane %v369, 2
        %v371 = vadd.f32 %v369, %v370
        %v372 = vrot.slane %v371, 1
        %v373 = vadd.f32 %v371, %v372
        %v374 = vadd.f32 %v290, %v294
        %v375 = vadd.f32 %v374, %v298
        %v376 = vadd.f32 %v375, %v302
        %v377 = vadd.f32 %v376, %v306
        %v378 = vadd.f32 %v377, %v310
        %v379 = vadd.f32 %v378, %v314
        %v380 = vadd.f32 %v379, %v318
        %v381 = vadd.f32 %v380, %v322
        %v382 = vadd.f32 %v381, %v326
        %v383 = vadd.f32 %v382, %v330
        %v384 = vadd.f32 %v383, %v334
        %v385 = vadd.f32 %v384, %v338
        %v386 = vadd.f32 %v385, %v342
        %v387 = vadd.f32 %v386, %v346
        %v388 = vadd.f32 %v387, %v350
        %v389 = vrot.slane %v388, 4
        %v390 = vadd.f32 %v388, %v389
        %v391 = vrot.slane %v390, 2
        %v392 = vadd.f32 %v390, %v391
        %v393 = vrot.slane %v392, 1
        %v394 = vadd.f32 %v392, %v393
        %v395 = vadd.f32 %v291, %v295
        %v396 = vadd.f32 %v395, %v299
        %v397 = vadd.f32 %v396, %v303
        %v398 = vadd.f32 %v397, %v307
        %v399 = vadd.f32 %v398, %v311
        %v400 = vadd.f32 %v399, %v315
        %v401 = vadd.f32 %v400, %v319
        %v402 = vadd.f32 %v401, %v323
        %v403 = vadd.f32 %v402, %v327
        %v404 = vadd.f32 %v403, %v331
        %v405 = vadd.f32 %v404, %v335
        %v406 = vadd.f32 %v405, %v339
        %v407 = vadd.f32 %v406, %v343
        %v408 = vadd.f32 %v407, %v347
        %v409 = vadd.f32 %v408, %v351
        %v410 = vrot.slane %v409, 4
        %v411 = vadd.f32 %v409, %v410
        %v412 = vrot.slane %v411, 2
        %v413 = vadd.f32 %v411, %v412
        %v414 = vrot.slane %v413, 1
        %v415 = vadd.f32 %v413, %v414
        %v416 = vadd.f32 %v292, %v296
        %v417 = vadd.f32 %v416, %v300
        %v418 = vadd.f32 %v417, %v304
        %v419 = vadd.f32 %v418, %v308
        %v420 = vadd.f32 %v419, %v312
        %v421 = vadd.f32 %v420, %v316
        %v422 = vadd.f32 %v421, %v320
        %v423 = vadd.f32 %v422, %v324
        %v424 = vadd.f32 %v423, %v328
        %v425 = vadd.f32 %v424, %v332
        %v426 = vadd.f32 %v425, %v336
        %v427 = vadd.f32 %v426, %v340
        %v428 = vadd.f32 %v427, %v344
        %v429 = vadd.f32 %v428, %v348
        %v430 = vadd.f32 %v429, %v352
        %v431 = vrot.slane %v430, 4
        %v432 = vadd.f32 %v430, %v431
        %v433 = vrot.slane %v432, 2
        %v434 = vadd.f32 %v432, %v433
        %v435 = vrot.slane %v434, 1
        %v436 = vadd.f32 %v434, %v435
        %v437 = vmax.f32 %v373, 1e-24
        %v438 = vmax.f32 %v394, 1e-24
        %v439 = vmax.f32 %v415, 1e-24
        %v440 = vmax.f32 %v436, 1e-24
        %v441 = vrsqrt.pop %v437
        %v442 = vrsqrt.pop %v438
        %v443 = vrsqrt.pop %v439
        %v444 = vrsqrt.pop %v440
        %v477 = vunpack.c.l.b16 %v193
        %v478 = vunpack.c.h.b16 %v193
        %v479 = vunpack.c.l.b16 %v194
        %v480 = vunpack.c.h.b16 %v194
        %v481 = vunpack.c.l.b16 %v195
        %v482 = vunpack.c.h.b16 %v195
        %v483 = vunpack.c.l.b16 %v196
        %v484 = vunpack.c.h.b16 %v196
        %v485 = vunpack.c.l.b16 %v197
        %v486 = vunpack.c.h.b16 %v197
        %v487 = vunpack.c.l.b16 %v198
        %v488 = vunpack.c.h.b16 %v198
        %v489 = vunpack.c.l.b16 %v199
        %v490 = vunpack.c.h.b16 %v199
        %v491 = vunpack.c.l.b16 %v200
        %v492 = vunpack.c.h.b16 %v200
        %v493 = vunpack.c.l.b16 %v201
        %v494 = vunpack.c.h.b16 %v201
        %v495 = vunpack.c.l.b16 %v202
        %v496 = vunpack.c.h.b16 %v202
        %v497 = vunpack.c.l.b16 %v203
        %v498 = vunpack.c.h.b16 %v203
        %v499 = vunpack.c.l.b16 %v204
        %v500 = vunpack.c.h.b16 %v204
        %v501 = vunpack.c.l.b16 %v205
        %v502 = vunpack.c.h.b16 %v205
        %v503 = vunpack.c.l.b16 %v206
        %v504 = vunpack.c.h.b16 %v206
        %v505 = vunpack.c.l.b16 %v207
        %v506 = vunpack.c.h.b16 %v207
        %v507 = vunpack.c.l.b16 %v208
        %v508 = vunpack.c.h.b16 %v208
        %v509 = vunpack.c.l.b16 %v209
        %v510 = vunpack.c.h.b16 %v209
        %v511 = vunpack.c.l.b16 %v210
        %v512 = vunpack.c.h.b16 %v210
        %v513 = vunpack.c.l.b16 %v211
        %v514 = vunpack.c.h.b16 %v211
        %v515 = vunpack.c.l.b16 %v212
        %v516 = vunpack.c.h.b16 %v212
        %v517 = vunpack.c.l.b16 %v213
        %v518 = vunpack.c.h.b16 %v213
        %v519 = vunpack.c.l.b16 %v214
        %v520 = vunpack.c.h.b16 %v214
        %v521 = vunpack.c.l.b16 %v215
        %v522 = vunpack.c.h.b16 %v215
        %v523 = vunpack.c.l.b16 %v216
        %v524 = vunpack.c.h.b16 %v216
        %v525 = vunpack.c.l.b16 %v217
        %v526 = vunpack.c.h.b16 %v217
        %v527 = vunpack.c.l.b16 %v218
        %v528 = vunpack.c.h.b16 %v218
        %v529 = vunpack.c.l.b16 %v219
        %v530 = vunpack.c.h.b16 %v219
        %v531 = vunpack.c.l.b16 %v220
        %v532 = vunpack.c.h.b16 %v220
        %v533 = vunpack.c.l.b16 %v221
        %v534 = vunpack.c.h.b16 %v221
        %v535 = vunpack.c.l.b16 %v222
        %v536 = vunpack.c.h.b16 %v222
        %v537 = vunpack.c.l.b16 %v223
        %v538 = vunpack.c.h.b16 %v223
        %v539 = vunpack.c.l.b16 %v224
        %v540 = vunpack.c.h.b16 %v224
        %v541 = vpack.c.b16 %v481, %v477
        %v542 = vpack.c.b16 %v482, %v478
        %v543 = vpack.c.b16 %v483, %v479
        %v544 = vpack.c.b16 %v484, %v480
        %v545 = vpack.c.b16 %v489, %v485
        %v546 = vpack.c.b16 %v490, %v486
        %v547 = vpack.c.b16 %v491, %v487
        %v548 = vpack.c.b16 %v492, %v488
        %v549 = vpack.c.b16 %v497, %v493
        %v550 = vpack.c.b16 %v498, %v494
        %v551 = vpack.c.b16 %v499, %v495
        %v552 = vpack.c.b16 %v500, %v496
        %v553 = vpack.c.b16 %v505, %v501
        %v554 = vpack.c.b16 %v506, %v502
        %v555 = vpack.c.b16 %v507, %v503
        %v556 = vpack.c.b16 %v508, %v504
        %v557 = vpack.c.b16 %v513, %v509
        %v558 = vpack.c.b16 %v514, %v510
        %v559 = vpack.c.b16 %v515, %v511
        %v560 = vpack.c.b16 %v516, %v512
        %v561 = vpack.c.b16 %v521, %v517
        %v562 = vpack.c.b16 %v522, %v518
        %v563 = vpack.c.b16 %v523, %v519
        %v564 = vpack.c.b16 %v524, %v520
        %v565 = vpack.c.b16 %v529, %v525
        %v566 = vpack.c.b16 %v530, %v526
        %v567 = vpack.c.b16 %v531, %v527
        %v568 = vpack.c.b16 %v532, %v528
        %v569 = vpack.c.b16 %v537, %v533
        %v570 = vpack.c.b16 %v538, %v534
        %v571 = vpack.c.b16 %v539, %v535
        %v572 = vpack.c.b16 %v540, %v536
        %605 = vmatprep.subr.bf16.mxu0 %v542
        %606 = vmatpush1.bf16.msra.mxu0 %v541
        %607 = vmatprep.subr.bf16.mxu0 %v546
        %608 = vmatpush1.bf16.msra.mxu0 %v545
        %609 = vmatprep.subr.bf16.mxu0 %v550
        %610 = vmatpush1.bf16.msra.mxu0 %v549
        %611 = vmatprep.subr.bf16.mxu0 %v554
        %612 = vmatpush1.bf16.msra.mxu0 %v553
        %613 = vmatprep.subr.bf16.mxu0 %v558
        %614 = vmatpush1.bf16.msra.mxu0 %v557
        %615 = vmatprep.subr.bf16.mxu0 %v562
        %616 = vmatpush1.bf16.msra.mxu0 %v561
        %617 = vmatprep.subr.bf16.mxu0 %v566
        %618 = vmatpush1.bf16.msra.mxu0 %v565
        %619 = vmatprep.subr.bf16.mxu0 %v570
        %620 = vmatpush1.bf16.msra.mxu0 %v569
        %621 = vmatprep.subr.bf16.mxu0 0
        %622 = vmatpush1.bf16.msra.mxu0 0
        %623 = vmatprep.subr.bf16.mxu0 0
        %624 = vmatpush1.bf16.msra.mxu0 0
        %625 = vmatprep.subr.bf16.mxu0 0
        %626 = vmatpush1.bf16.msra.mxu0 0
        %627 = vmatprep.subr.bf16.mxu0 0
        %628 = vmatpush1.bf16.msra.mxu0 0
        %629 = vmatprep.subr.bf16.mxu0 0
        %630 = vmatpush1.bf16.msra.mxu0 0
        %631 = vmatprep.subr.bf16.mxu0 0
        %632 = vmatpush1.bf16.msra.mxu0 0
        %633 = vmatprep.subr.bf16.mxu0 0
        %634 = vmatpush1.bf16.msra.mxu0 0
        %635 = vmatprep.subr.bf16.mxu0 0
        %636 = vmatpush1.bf16.msra.mxu0 0
        %637 = vmatprep.mubr.bf16.mxu0 0
        %638 = vmatmul.mubr.bf16.gmra.mrb[0].mxu0 %v192
        %v639 = vpop.f32.mrb[0].mxu0
        %v640 = vadd.f32 0.0, %v639
        %v641 = vpop.f32.mrb[0].mxu0
        %v642 = vadd.f32 0.0, %v641
        %v643 = vpop.f32.mrb[0].mxu0
        %v644 = vpop.f32.mrb[0].mxu0
        %645 = vdwg.mxu0
        %646 = vmatprep.subr.bf16.mxu0 %v544
        %647 = vmatpush1.bf16.msra.mxu0 %v543
        %648 = vmatprep.subr.bf16.mxu0 %v548
        %649 = vmatpush1.bf16.msra.mxu0 %v547
        %650 = vmatprep.subr.bf16.mxu0 %v552
        %651 = vmatpush1.bf16.msra.mxu0 %v551
        %652 = vmatprep.subr.bf16.mxu0 %v556
        %653 = vmatpush1.bf16.msra.mxu0 %v555
        %654 = vmatprep.subr.bf16.mxu0 %v560
        %655 = vmatpush1.bf16.msra.mxu0 %v559
        %656 = vmatprep.subr.bf16.mxu0 %v564
        %657 = vmatpush1.bf16.msra.mxu0 %v563
        %658 = vmatprep.subr.bf16.mxu0 %v568
        %659 = vmatpush1.bf16.msra.mxu0 %v567
        %660 = vmatprep.subr.bf16.mxu0 %v572
        %661 = vmatpush1.bf16.msra.mxu0 %v571
        %662 = vmatprep.subr.bf16.mxu0 0
        %663 = vmatpush1.bf16.msra.mxu0 0
        %664 = vmatprep.subr.bf16.mxu0 0
        %665 = vmatpush1.bf16.msra.mxu0 0
        %666 = vmatprep.subr.bf16.mxu0 0
        %667 = vmatpush1.bf16.msra.mxu0 0
        %668 = vmatprep.subr.bf16.mxu0 0
        %669 = vmatpush1.bf16.msra.mxu0 0
        %670 = vmatprep.subr.bf16.mxu0 0
        %671 = vmatpush1.bf16.msra.mxu0 0
        %672 = vmatprep.subr.bf16.mxu0 0
        %673 = vmatpush1.bf16.msra.mxu0 0
        %674 = vmatprep.subr.bf16.mxu0 0
        %675 = vmatpush1.bf16.msra.mxu0 0
        %676 = vmatprep.subr.bf16.mxu0 0
        %677 = vmatpush1.bf16.msra.mxu0 0
        %678 = vmatprep.mubr.bf16.mxu0 0
        %679 = vmatmul.mubr.bf16.gmra.mrb[0].mxu0 %v192
        %v680 = vpop.f32.mrb[0].mxu0
        %v681 = vadd.f32 0.0, %v680
        %v682 = vpop.f32.mrb[0].mxu0
        %v683 = vadd.f32 0.0, %v682
        %v684 = vpop.f32.mrb[0].mxu0
        %v685 = vpop.f32.mrb[0].mxu0
        %686 = vdwg.mxu0
        %v687 = vmul.f32 %v640, %v441
        %v688 = vmul.f32 %v642, %v442
        %v689 = vmul.f32 %v681, %v443
        %v690 = vmul.f32 %v683, %v444
        %v691 = vmax.f32 %v687, -0.9999999
        %v692 = vmax.f32 %v688, -0.9999999
        %v693 = vmax.f32 %v689, -0.9999999
        %v694 = vmax.f32 %v690, -0.9999999
        %v695 = vmin.f32 %v691, 0.9999999
        %v696 = vmin.f32 %v692, 0.9999999
        %v697 = vmin.f32 %v693, 0.9999999
        %v698 = vmin.f32 %v694, 0.9999999
        %v699 = vmul.f32 %v695, 56.165283
        %v700 = vmul.f32 %v696, 56.165283
        %v701 = vmul.f32 %v697, 56.165283
        %v702 = vmul.f32 %v698, 56.165283
        %v703 = vmul.f32 %v695, %v695
        %v704 = vmul.f32 %v696, %v696
        %v705 = vmul.f32 %v697, %v697
        %v706 = vmul.f32 %v698, %v698
        %v707 = vsub.f32 1.0, %v703
        %v708 = vsub.f32 1.0, %v704
        %v709 = vsub.f32 1.0, %v705
        %v710 = vsub.f32 1.0, %v706
        %v711 = vrsqrt.pop %v707
        %v712 = vmul.f32 %v707, %v711
        %vm713 = vcmp.eq.f32.partialorder %v707, inf
        %v714 = vsel %vm713, %v707, %v712
        %vm715 = vcmp.eq.f32.partialorder %v707, 0.0
        %v716 = vand.u32 %v707, 2147483648
        %v717 = vsel %vm715, %v716, %v714
        %v718 = vrsqrt.pop %v708
        %v719 = vmul.f32 %v708, %v718
        %vm720 = vcmp.eq.f32.partialorder %v708, inf
        %v721 = vsel %vm720, %v708, %v719
        %vm722 = vcmp.eq.f32.partialorder %v708, 0.0
        %v723 = vand.u32 %v708, 2147483648
        %v724 = vsel %vm722, %v723, %v721
        %v725 = vrsqrt.pop %v709
        %v726 = vmul.f32 %v709, %v725
        %vm727 = vcmp.eq.f32.partialorder %v709, inf
        %v728 = vsel %vm727, %v709, %v726
        %vm729 = vcmp.eq.f32.partialorder %v709, 0.0
        %v730 = vand.u32 %v709, 2147483648
        %v731 = vsel %vm729, %v730, %v728
        %v732 = vrsqrt.pop %v710
        %v733 = vmul.f32 %v710, %v732
        %vm734 = vcmp.eq.f32.partialorder %v710, inf
        %v735 = vsel %vm734, %v710, %v733
        %vm736 = vcmp.eq.f32.partialorder %v710, 0.0
        %v737 = vand.u32 %v710, 2147483648
        %v738 = vsel %vm736, %v737, %v735
        %v739 = vmul.f32 %v717, 30.683235
        %v740 = vmul.f32 %v724, 30.683235
        %v741 = vmul.f32 %v731, 30.683235
        %v742 = vmul.f32 %v738, 30.683235
        %v743 = vsub.f32 %v699, %v739
        %v744 = vsub.f32 %v700, %v740
        %v745 = vsub.f32 %v701, %v741
        %v746 = vsub.f32 %v702, %v742
        %v747 = vlaneseq
        %v748 = vand.u32 %v747, 127
        %v749 = vadd.s32 %v748, 128
        %v750 = vadd.s32 %v748, 256
        %v751 = vadd.s32 %v748, 384
        %s752 = smul.u32 %s20, 512
        %v753 = vstv %s752
        %v754 = vadd.s32 %v748, %v753
        %v755 = vadd.s32 %v749, %v753
        %v756 = vadd.s32 %v750, %v753
        %v757 = vadd.s32 %v751, %v753
        %v758 = vld [vmem:[%s0] sm:$0xff]
        %759 = vset.pattern.permute.xlu0 0
        %760 = vperm.xlu0 %759, %v758
        %v761 = vpop.permute.xlu0 %760
        %vm762 = vcmp.eq.s32.totalorder %v754, %v761
        %vm763 = vcmp.eq.s32.totalorder %v755, %v761
        %vm764 = vcmp.eq.s32.totalorder %v756, %v761
        %vm765 = vcmp.eq.s32.totalorder %v757, %v761
        %v766 = vmul.f32 %v687, 64.0
        %v767 = vmul.f32 %v688, 64.0
        %v768 = vmul.f32 %v689, 64.0
        %v769 = vmul.f32 %v690, 64.0
        %v770 = vsel %vm762, %v743, %v766
        %v771 = vsel %vm763, %v744, %v767
        %v772 = vsel %vm764, %v745, %v768
        %v773 = vsel %vm765, %v746, %v769
        %774 = vst [vmem:[%s188] sm:$0xff] %v770
        %775 = vst [vmem:[%s188 + $0x8] sm:$0xff] %v771
        %776 = vst [vmem:[%s188 + $0x10] sm:$0xff] %v772
        %777 = vst [vmem:[%s188 + $0x18] sm:$0xff] %v773
        %s778 = sand.u32 %s96, 1
        %s779 = scalar_lea.sflag [#allocation4], %s778
        %s780 = sand.u32 %s96, 1
        %s781 = smul.addr %s780, 32
        %s782 = scalar_lea.vmem [#allocation5], %s781
        // Predicated region
        $region37: #{tpu_custom_call.1} parent=31 // pred_check
          %p783 = pneg %p106
        $region38: #{tpu_custom_call.1} parent=31 // pred_check_branch
          %785 = sbr.rel (%p783) target = $region40
        $region39: #{tpu_custom_call.1} parent=31 // pred_region
          %s786 = smul.u32 4, %s20
          %s788 = ssub.s32 512, 512
          %789 = vsyncadd %s779, %s788
          %s790 = smul.addr %s786, 128
          %s791 = scalar_lea.hbm %s3, %s790
          %s793 = sshll.u32 %s782, 4
          %s794 = int_to_ptr.vmem [resolvable:$true] %s793
          %796 = dma.vmem_to_hbm [thread:$0]  %s794, 512, %s791, %s779
        $region40: #{tpu_custom_call.1} parent=31 // pred_fallthru
          _
      $region32: #{tpu_custom_call.1} parent=5 // pred_fallthru
        _
      %p797 = scmp.le.s32.totalorder 2, %s15
      // Predicated region
      $region41: #{tpu_custom_call.1} parent=5 // pred_check
        %p798 = pneg %p797
      $region42: #{tpu_custom_call.1} parent=5 // pred_check_branch
        %800 = sbr.rel (%p798) target = $region44
      $region43: #{tpu_custom_call.1} parent=5 // pred_region
        %s801 = ssub.s32 %s15, 2
        // Predicated region
        $region45: #{tpu_custom_call.1} parent=43 // pred_check
          %p802 = pneg %p112
        $region46: #{tpu_custom_call.1} parent=43 // pred_check_branch
          %804 = sbr.rel (%p802) target = $region48
        $region47: #{tpu_custom_call.1} parent=43 // pred_region
          %s805 = sand.u32 %s97, 1
          %s806 = scalar_lea.sflag [#allocation4], %s805
          %s807 = sand.u32 %s97, 1
          %s808 = smul.addr %s807, 32
          %s809 = scalar_lea.vmem [#allocation5], %s808
          %810 = dma.done %s806, 512
        $region48: #{tpu_custom_call.1} parent=43 // pred_fallthru
          _
      $region44: #{tpu_custom_call.1} parent=5 // pred_fallthru
        _
    $region6: #{tpu_custom_call.1} parent=1 // loop_footer
      %s19 = sadd.s32 1, %s15
    $region7: #{tpu_custom_call.1} parent=1 // loop_footer_branch
      %14 = sbr.rel target = $region3
    $region8: #{tpu_custom_call.1} parent=1 // loop_exit
      _
    %811 = vsyncpa [#allocation3], 1
    %s812 = scalar_lea.sflag [#allocation3], 1
    %813 = vsyncpa %s812, 1
    %814 = vsyncpa [#allocation4], 1
    %s815 = scalar_lea.sflag [#allocation4], 1
    %816 = vsyncpa %s815, 1

</llo_original>
